<compile_context>
chip_gen: v6e
topology: v6e:2x2x1
jax: 0.10.0
libtpu: 0.0.40
codegen_flags: <defaults>
</compile_context>

<pallas_src>
import math

import jax
import jax.numpy as jnp
from jax.experimental import pallas as pl
from jax.experimental.pallas import tpu as pltpu


# ----------------------------------------------------------------------------
# Kernel
# ----------------------------------------------------------------------------
def _loreft_kernel(x_ref, wbt_ref, bb_ref, dt_ref, r_ref, ba_ref, out_ref):
    # base_layer(x):  x @ W_base^T + b_base   (f32 accumulation on the MXU)
    result = (
        jnp.dot(x_ref[...], wbt_ref[...], preferred_element_type=jnp.float32)
        + bb_ref[...]
    )  # (TM, d_out_p) float32

    # Folded low-rank path:
    #   src - rotated = result @ (A - R)^T + b_A
    #   offset        = (src - rotated) @ R
    # MXU operands fed in the weight dtype (no-op for f32 weights), f32 accum.
    src = (
        jnp.dot(result.astype(dt_ref.dtype), dt_ref[...],
                preferred_element_type=jnp.float32)
        + ba_ref[...]
    )  # (TM, r) float32, VMEM-only intermediate
    offset = jnp.dot(src.astype(r_ref.dtype), r_ref[...],
                     preferred_element_type=jnp.float32)  # (TM, d_out_p) f32

    out_ref[...] = (result + offset).astype(out_ref.dtype)


# ----------------------------------------------------------------------------
# One-time parameter preparation (run at parameter-load time, NOT per call)
# ----------------------------------------------------------------------------
def prepare_loreft_params(w_base, b_base, R, A, b_A, *, compute_dtype=None):
    """Pre-transpose / fold / cast / lane-pad the LoReFT parameters."""
    d_out, d_in = w_base.shape
    r = R.shape[0]
    cdt = (jnp.dtype(compute_dtype) if compute_dtype is not None
           else jnp.dtype(w_base.dtype))

    # lane-dense output axis: pad d_out up to a multiple of 128
    d_out_p = ((d_out + 127) // 128) * 128
    pad = d_out_p - d_out

    w_base_t = jnp.transpose(w_base).astype(cdt)                 # (d_in, d_out)
    b_base2d = b_base.reshape(1, d_out).astype(jnp.float32)
    d_t = jnp.transpose(
        A.astype(jnp.float32) - R.astype(jnp.float32)).astype(cdt)  # (d_out, r)
    r_mat = R.astype(cdt)                                        # (r, d_out)
    b_a2d = b_A.reshape(1, r).astype(jnp.float32)

    if pad:
        # padded result/offset columns are exactly zero by construction
        w_base_t = jnp.pad(w_base_t, ((0, 0), (0, pad)))
        b_base2d = jnp.pad(b_base2d, ((0, 0), (0, pad)))
        d_t = jnp.pad(d_t, ((0, pad), (0, 0)))
        r_mat = jnp.pad(r_mat, ((0, 0), (0, pad)))

    return {
        "w_base_t": w_base_t, "b_base": b_base2d, "D_t": d_t, "R": r_mat,
        "b_A": b_a2d, "d_in": d_in, "d_out": d_out,
        "d_out_padded": d_out_p, "r": r,
    }


# ----------------------------------------------------------------------------
# VMEM budgeting & tile selection
# ----------------------------------------------------------------------------
def _vmem_capacity_bytes() -> int:
    try:
        return int(pltpu.get_tpu_info().vmem_capacity_bytes)
    except Exception:
        return 64 * 2**20  # conservative fallback: v7x per-TensorCore VMEM


def _sublane_granule(dtype) -> int:
    # rows per packed vreg sublane group: f32 -> 8, bf16 -> 16, int8/fp8 -> 32
    return max(8, (8 * 4) // jnp.dtype(dtype).itemsize)


def _round_up(x: int, g: int) -> int:
    return ((x + g - 1) // g) * g


def _vmem_needed_bytes(tm, d_in, d_out_p, r, x_item, o_item, w_item) -> int:
    tiles = 2 * tm * (d_in * x_item + d_out_p * o_item)          # x/out dbl-buf
    weights = w_item * (d_in * d_out_p + 2 * d_out_p * r) + 4 * (d_out_p + r)
    # f32 intermediates (result, offset, src) + cast copy of result
    inter = 4 * tm * (2 * d_out_p + r) + w_item * tm * d_out_p
    return tiles + weights + inter


def _choose_tm(n, d_in, d_out_p, r, x_dtype, out_dtype, w_dtype, vmem_budget):
    gran = _sublane_granule(x_dtype)
    x_it = jnp.dtype(x_dtype).itemsize
    o_it = jnp.dtype(out_dtype).itemsize
    w_it = jnp.dtype(w_dtype).itemsize

    def fits(tm):
        need = int(1.2 * _vmem_needed_bytes(tm, d_in, d_out_p, r,
                                            x_it, o_it, w_it)) + (2 << 20)
        return need <= vmem_budget

    if n <= gran:
        return gran
    # big-N: biggest MXU-aligned tile that fits and keeps >=2 grid steps
    for tm in (1024, 512, 256, 128):
        if tm <= n and pl.cdiv(n, tm) >= 2 and fits(tm):
            return tm
    # small-N (or tight-VMEM) fallback: two sublane-aligned tiles so both
    # v7x TensorCores get work
    tm = max(gran, _round_up(pl.cdiv(n, 2), gran))
    while tm > gran and not fits(tm):
        tm = max(gran, _round_up(tm // 2, gran))
    return tm


# ----------------------------------------------------------------------------
# Forward
# ----------------------------------------------------------------------------
def loreft_forward(x, params):
    """x: (..., in_features) -> (..., out_features), dtype preserved."""
    out_dtype = x.dtype
    lead_shape = x.shape[:-1]
    d_in = params["d_in"]
    d_out = params["d_out"]
    d_out_p = params["d_out_padded"]
    r = params["r"]
    n = int(math.prod(lead_shape))
    x2d = x.reshape(n, d_in)

    w_dtype = params["w_base_t"].dtype
    vmem_cap = _vmem_capacity_bytes()
    vmem_budget = int(0.85 * vmem_cap)
    tm = _choose_tm(n, d_in, d_out_p, r, x.dtype, out_dtype, w_dtype,
                    vmem_budget)
    grid = (pl.cdiv(n, tm),)

    x_item = jnp.dtype(x.dtype).itemsize
    o_item = jnp.dtype(out_dtype).itemsize
    w_item = jnp.dtype(w_dtype).itemsize
    need = int(1.25 * _vmem_needed_bytes(tm, d_in, d_out_p, r,
                                         x_item, o_item, w_item)) + (2 << 20)
    vmem_limit = int(min(int(0.9 * vmem_cap), max(need, 16 * 2**20)))

    w_bytes = w_item * (d_in * d_out_p + 2 * d_out_p * r)
    cost = pl.CostEstimate(
        flops=2 * n * d_in * d_out_p + 4 * n * d_out_p * r,
        transcendentals=0,
        bytes_accessed=n * d_in * x_item + w_bytes + n * d_out_p * o_item,
    )

    def _const_spec(shape):
        idx = lambda i: (0,) * len(shape)
        try:
            # constant index_map -> single-buffer the resident weights
            return pl.BlockSpec(shape, idx, pipeline_mode=pl.Buffered(1))
        except TypeError:
            return pl.BlockSpec(shape, idx)

    out = pl.pallas_call(
        _loreft_kernel,
        out_shape=jax.ShapeDtypeStruct((n, d_out_p), out_dtype),
        grid_spec=pltpu.PrefetchScalarGridSpec(
            num_scalar_prefetch=0,
            grid=grid,
            in_specs=[
                pl.BlockSpec((tm, d_in), lambda i: (i, 0)),  # x tile (streamed)
                _const_spec((d_in, d_out_p)),                # W_base^T (resident)
                _const_spec((1, d_out_p)),                   # b_base
                _const_spec((d_out_p, r)),                   # (A - R)^T
                _const_spec((r, d_out_p)),                   # R
                _const_spec((1, r)),                         # b_A
            ],
            out_specs=pl.BlockSpec((tm, d_out_p), lambda i: (i, 0)),
        ),
        compiler_params=pltpu.CompilerParams(
            dimension_semantics=("parallel",),
            vmem_limit_bytes=vmem_limit,
        ),
        cost_estimate=cost,
    )(x2d, params["w_base_t"], params["b_base"], params["D_t"], params["R"],
      params["b_A"])

    if d_out_p != d_out:
        out = out[:, :d_out]
    return out.reshape(*lead_shape, d_out)


# ----------------------------------------------------------------------------
# Reference & self-test
# ----------------------------------------------------------------------------
def _reference(x, w_base, b_base, R, A, b_A):
    result = (x.astype(jnp.float32) @ w_base.T.astype(jnp.float32)
              ) + b_base.astype(jnp.float32)
    rotated = result @ R.T.astype(jnp.float32)
    learned = result @ A.T.astype(jnp.float32) + b_A.astype(jnp.float32)
    offset = (learned - rotated) @ R.astype(jnp.float32)
    return (result + offset).astype(x.dtype)


if __name__ == "__main__":
    key = jax.random.PRNGKey(0)
    k_x, k_w, k_bw, k_r, k_a, k_ba, k_x2 = jax.random.split(key, 7)

    batch, seq = 2, 8
    in_features, out_features, r = 32, 32, 8

    # Input
    x = jax.random.normal(k_x, (batch, seq, in_features), dtype=jnp.float32)

    # Base nn.Linear(in_features, out_features) — deterministic init
    lim_w = 1.0 / math.sqrt(in_features)
    w_base = jax.random.uniform(
        k_w, (out_features, in_features), minval=-lim_w, maxval=lim_w,
        dtype=jnp.float32)
    b_base = jax.random.uniform(
        k_bw, (out_features,), minval=-lim_w, maxval=lim_w, dtype=jnp.float32)

    # reft_R: orthogonal Linear(out_features, r) -> weight (r, out_features)
    # with orthonormal rows (deterministic via QR instead of Cayley param).
    raw = jax.random.normal(k_r, (out_features, r), dtype=jnp.float32)
    Q, _ = jnp.linalg.qr(raw)          # (out_features, r), orthonormal columns
    R = Q.T                            # (r, out_features), orthonormal rows

    # reft_A: Linear(out_features, r), kaiming_uniform_(a=sqrt(5)) on weight
    lim_a = 1.0 / math.sqrt(out_features)
    A = jax.random.uniform(
        k_a, (r, out_features), minval=-lim_a, maxval=lim_a, dtype=jnp.float32)
    b_A = jax.random.uniform(
        k_ba, (r,), minval=-lim_a, maxval=lim_a, dtype=jnp.float32)

    # One-time weight prep (hoisted out of the per-call path).
    params = prepare_loreft_params(w_base, b_base, R, A, b_A)

    out = jax.block_until_ready(loreft_forward(x, params))
    ref = _reference(
        x.reshape(-1, in_features), w_base, b_base, R, A, b_A
    ).reshape(batch, seq, out_features)
    assert out.shape == (batch, seq, out_features)
    assert out.dtype == x.dtype
    assert jnp.allclose(out, ref, atol=1e-4, rtol=1e-4)

    # Exercise the masked edge-block path (N not a multiple of TM).
    x_odd = jax.random.normal(k_x2, (1, 13, in_features), dtype=jnp.float32)
    out_odd = jax.block_until_ready(loreft_forward(x_odd, params))
    ref_odd = _reference(
        x_odd.reshape(-1, in_features), w_base, b_base, R, A, b_A
    ).reshape(1, 13, out_features)
    assert jnp.allclose(out_odd, ref_odd, atol=1e-4, rtol=1e-4)

    print("KERNEL_OK")
</pallas_src>

<mosaic_0001>
module attributes {stable_mosaic.version = 11 : i64} {
  func.func @_loreft_kernel(%arg0: i32, %arg1: memref<8x32xf32, #tpu.memory_space<vmem>>, %arg2: memref<32x128xf32, #tpu.memory_space<vmem>>, %arg3: memref<1x128xf32, #tpu.memory_space<vmem>>, %arg4: memref<128x8xf32, #tpu.memory_space<vmem>>, %arg5: memref<8x128xf32, #tpu.memory_space<vmem>>, %arg6: memref<1x8xf32, #tpu.memory_space<vmem>>, %arg7: memref<8x128xf32, #tpu.memory_space<vmem>>) attributes {dimension_semantics = [#tpu.dimension_semantics<parallel>], iteration_bounds = array<i64: 2>, scalar_prefetch = 0 : i64, scratch_operands = 0 : i64, tpu.core_type = #tpu.core_type<tc>, window_params = [{transform_indices = @transform_0, window_bounds = array<i64: 8, 32>}, {pipeline_mode = #tpu.pipeline_mode<synchronous>, transform_indices = @transform_1, window_bounds = array<i64: 32, 128>}, {pipeline_mode = #tpu.pipeline_mode<synchronous>, transform_indices = @transform_2, window_bounds = array<i64: 1, 128>}, {pipeline_mode = #tpu.pipeline_mode<synchronous>, transform_indices = @transform_3, window_bounds = array<i64: 128, 8>}, {pipeline_mode = #tpu.pipeline_mode<synchronous>, transform_indices = @transform_4, window_bounds = array<i64: 8, 128>}, {pipeline_mode = #tpu.pipeline_mode<synchronous>, transform_indices = @transform_5, window_bounds = array<i64: 1, 8>}, {transform_indices = @transform_6, window_bounds = array<i64: 8, 128>}]} {
    %c0 = arith.constant 0 : index
    %c0_0 = arith.constant 0 : index
    %0 = vector.load %arg1[%c0, %c0_0] : memref<8x32xf32, #tpu.memory_space<vmem>>, vector<8x32xf32>
    %c0_1 = arith.constant 0 : index
    %c0_2 = arith.constant 0 : index
    %1 = vector.load %arg2[%c0_1, %c0_2] : memref<32x128xf32, #tpu.memory_space<vmem>>, vector<32x128xf32>
    %cst = arith.constant dense<0.000000e+00> : vector<8x128xf32>
    %2 = tpu.matmul %0, %1, %cst {dimension_numbers = #tpu.dot_dimension_numbers<[1], [0], [0], [1], [0, 0, 1, 1], [], []>} : vector<8x32xf32>, vector<32x128xf32>, vector<8x128xf32> -> vector<8x128xf32>
    %c0_3 = arith.constant 0 : index
    %c0_4 = arith.constant 0 : index
    %3 = vector.load %arg3[%c0_3, %c0_4] : memref<1x128xf32, #tpu.memory_space<vmem>>, vector<1x128xf32>
    %4 = vector.broadcast %3 : vector<1x128xf32> to vector<8x128xf32>
    %5 = arith.addf %2, %4 : vector<8x128xf32>
    %c0_5 = arith.constant 0 : index
    %c0_6 = arith.constant 0 : index
    %6 = vector.load %arg4[%c0_5, %c0_6] : memref<128x8xf32, #tpu.memory_space<vmem>>, vector<128x8xf32>
    %cst_7 = arith.constant dense<0.000000e+00> : vector<8x8xf32>
    %7 = tpu.matmul %5, %6, %cst_7 {dimension_numbers = #tpu.dot_dimension_numbers<[1], [0], [0], [1], [0, 0, 1, 1], [], []>} : vector<8x128xf32>, vector<128x8xf32>, vector<8x8xf32> -> vector<8x8xf32>
    %c0_8 = arith.constant 0 : index
    %c0_9 = arith.constant 0 : index
    %8 = vector.load %arg6[%c0_8, %c0_9] : memref<1x8xf32, #tpu.memory_space<vmem>>, vector<1x8xf32>
    %9 = vector.broadcast %8 : vector<1x8xf32> to vector<8x8xf32>
    %10 = arith.addf %7, %9 : vector<8x8xf32>
    %c0_10 = arith.constant 0 : index
    %c0_11 = arith.constant 0 : index
    %11 = vector.load %arg5[%c0_10, %c0_11] : memref<8x128xf32, #tpu.memory_space<vmem>>, vector<8x128xf32>
    %cst_12 = arith.constant dense<0.000000e+00> : vector<8x128xf32>
    %12 = tpu.matmul %10, %11, %cst_12 {dimension_numbers = #tpu.dot_dimension_numbers<[1], [0], [0], [1], [0, 0, 1, 1], [], []>} : vector<8x8xf32>, vector<8x128xf32>, vector<8x128xf32> -> vector<8x128xf32>
    %13 = arith.addf %5, %12 : vector<8x128xf32>
    %c0_13 = arith.constant 0 : index
    %c0_14 = arith.constant 0 : index
    %14 = vector.load %arg7[%c0_13, %c0_14] : memref<8x128xf32, #tpu.memory_space<vmem>>, vector<8x128xf32>
    tpu.vector_store %arg7[%c0_13, %c0_14], %13 {strides = array<i32>} : memref<8x128xf32, #tpu.memory_space<vmem>>, vector<8x128xf32>,
    return
  }
  func.func @transform_0(%arg0: i32) -> (i32, i32) {
    %c0_i32 = arith.constant 0 : i32
    %c0_i32_0 = arith.constant 0 : i32
    return %arg0, %c0_i32 : i32, i32
  }
  func.func @transform_1(%arg0: i32) -> (i32, i32) {
    %c0_i32 = arith.constant 0 : i32
    %c0_i32_0 = arith.constant 0 : i32
    %c0_i32_1 = arith.constant 0 : i32
    return %c0_i32, %c0_i32_0 : i32, i32
  }
  func.func @transform_2(%arg0: i32) -> (i32, i32) {
    %c0_i32 = arith.constant 0 : i32
    %c0_i32_0 = arith.constant 0 : i32
    %c0_i32_1 = arith.constant 0 : i32
    return %c0_i32, %c0_i32_0 : i32, i32
  }
  func.func @transform_3(%arg0: i32) -> (i32, i32) {
    %c0_i32 = arith.constant 0 : i32
    %c0_i32_0 = arith.constant 0 : i32
    %c0_i32_1 = arith.constant 0 : i32
    return %c0_i32, %c0_i32_0 : i32, i32
  }
  func.func @transform_4(%arg0: i32) -> (i32, i32) {
    %c0_i32 = arith.constant 0 : i32
    %c0_i32_0 = arith.constant 0 : i32
    %c0_i32_1 = arith.constant 0 : i32
    return %c0_i32, %c0_i32_0 : i32, i32
  }
  func.func @transform_5(%arg0: i32) -> (i32, i32) {
    %c0_i32 = arith.constant 0 : i32
    %c0_i32_0 = arith.constant 0 : i32
    %c0_i32_1 = arith.constant 0 : i32
    return %c0_i32, %c0_i32_0 : i32, i32
  }
  func.func @transform_6(%arg0: i32) -> (i32, i32) {
    %c0_i32 = arith.constant 0 : i32
    %c0_i32_0 = arith.constant 0 : i32
    return %arg0, %c0_i32 : i32, i32
  }
}

</mosaic_0001>

<llo_original>
// kernel: tpu_custom_call.1
$region0: #{tpu_custom_call.1}
  #allocation0 [shape = 'u32[]', space=smem, size = 0x4, offset = 0x4, fixed_abs, tag = 'smem constant byte address 0x4 - core index']
  #allocation1 [shape = 'u32[144,128]{1,0:T(1,128)}', space=vmem, size = 0x12000, scoped, tag = 'internal scratch']
  %s0 = inlined_call_operand.vmem [shape: f32[16,32], index: 0, kind: input, shape index: {}]
  %s1 = inlined_call_operand.vmem [shape: f32[32,128], index: 1, kind: input, shape index: {}]
  %s2 = inlined_call_operand.vmem [shape: f32[1,128], index: 2, kind: input, shape index: {}]
  %s3 = inlined_call_operand.vmem [shape: f32[128,8], index: 3, kind: input, shape index: {}]
  %s4 = inlined_call_operand.vmem [shape: f32[8,128], index: 4, kind: input, shape index: {}]
  %s5 = inlined_call_operand.vmem [shape: f32[1,8], index: 5, kind: input, shape index: {}]
  %s6 = inlined_call_operand.hbm [shape: f32[16,128], index: 6, kind: output, shape index: {}]
  %s7 = sld [smem:[#allocation0]]
  $region57: #{tpu_custom_call.1} parent=0
    _
  %s9 = ssub.s32 1, %s7
  %s10 = scalar_select 0, %s9, %s7
  $region1: #{tpu_custom_call.1} parent=0
    #allocation2 [shape = 'u8[8192]{0}', space=vmem, size = 0x2000, scoped, tag = 'output window, operand 0']
    #allocation3 [shape = 's32[2]{0}', space=sflag, size = 0x8, scoped, tag = 'scoped memory for tpu_custom_call.1']
    %11 = vsyncpa [#allocation3], 0
    %s12 = scalar_lea.sflag [#allocation3], 1
    %13 = vsyncpa %s12, 0
    loop: start=0, step=1, limit=4
    $region2: #{tpu_custom_call.1} parent=1 // loop_pre_header
      _
    $region3: #{tpu_custom_call.1} parent=1 // loop_header
      %s15 = sphi 0, %s19
      %p16 = scmp.ge.s32.totalorder %s15, 4
      %s25 = sphi 0, %s27
      %s28 = sphi 0, %s25
      %s29 = sphi 0, %s28
      %s45 = sphi 0, %s29
      %s49 = sphi 0, %s49
      %s51 = sphi 0, %s49
      %s52 = sphi 0, %s51
      %s66 = sphi 0, %s52
      %s70 = sphi 0, %s70
      %s72 = sphi 0, %s70
      %s73 = sphi 0, %s72
      %s87 = sphi 0, %s73
      %s91 = sphi 0, %s91
      %s93 = sphi 0, %s91
      %s94 = sphi 0, %s93
      %s108 = sphi 0, %s94
      %s112 = sphi 0, %s112
      %s114 = sphi 0, %s112
      %s115 = sphi 0, %s114
      %s129 = sphi 0, %s115
      %s133 = sphi 0, %s133
      %s135 = sphi 0, %s133
      %s136 = sphi 0, %s135
      %s150 = sphi 0, %s136
      %s156 = sphi 0, %s158
      %s159 = sphi 0, %s156
      %s160 = sphi 0, %s159
      %s176 = sphi 0, %s160
    $region4: #{tpu_custom_call.1} parent=1 // loop_header_branch
      %18 = sbr.rel (%p16) target = $region8
    $region5: #{tpu_custom_call.1} parent=1 // loop_body
      %s20 = ssub.s32 %s15, 1
      %s21 = ssub.s32 %s15, 2
      %s22 = sadd.s32 %s15, 1
      %s23 = ssub.s32 %s15, %s22
      %p24 = scmp.eq.s32.totalorder %s23, 0
      %s26 = sadd.s32 %s25, 1
      %s27 = scalar_select %p24, %s25, %s26
      %p30 = pneg %p24
      %p31 = scmp.eq.s32.totalorder %s15, 1
      %p32 = por %p30, %p31
      %p33 = scmp.ne.s32.totalorder %s25, %s28
      %p34 = scmp.eq.s32.totalorder %s15, 0
      %p35 = por %p33, %p34
      %p36 = scmp.ne.s32.totalorder %s25, %s28
      %p37 = scmp.eq.s32.totalorder %s20, 1
      %p38 = por %p36, %p37
      %p39 = scmp.ne.s32.totalorder %s28, %s29
      %p40 = scmp.eq.s32.totalorder %s20, 0
      %p41 = por %p39, %p40
      %p42 = scmp.ne.s32.totalorder %s28, %s29
      %p43 = scmp.eq.s32.totalorder %s21, 1
      %p44 = por %p42, %p43
      %p46 = scmp.ne.s32.totalorder %s29, %s45
      %p47 = scmp.eq.s32.totalorder %s21, 0
      %p48 = por %p46, %p47
      %s50 = sadd.s32 %s49, 1
      %p53 = scmp.eq.s32.totalorder %s15, 1
      %p54 = scmp.ne.s32.totalorder %s49, %s51
      %p55 = scmp.eq.s32.totalorder %s15, 0
      %p56 = por %p54, %p55
      %p57 = scmp.ne.s32.totalorder %s49, %s51
      %p58 = scmp.eq.s32.totalorder %s20, 1
      %p59 = por %p57, %p58
      %p60 = scmp.ne.s32.totalorder %s51, %s52
      %p61 = scmp.eq.s32.totalorder %s20, 0
      %p62 = por %p60, %p61
      %p63 = scmp.ne.s32.totalorder %s51, %s52
      %p64 = scmp.eq.s32.totalorder %s21, 1
      %p65 = por %p63, %p64
      %p67 = scmp.ne.s32.totalorder %s52, %s66
      %p68 = scmp.eq.s32.totalorder %s21, 0
      %p69 = por %p67, %p68
      %s71 = sadd.s32 %s70, 1
      %p74 = scmp.eq.s32.totalorder %s15, 1
      %p75 = scmp.ne.s32.totalorder %s70, %s72
      %p76 = scmp.eq.s32.totalorder %s15, 0
      %p77 = por %p75, %p76
      %p78 = scmp.ne.s32.totalorder %s70, %s72
      %p79 = scmp.eq.s32.totalorder %s20, 1
      %p80 = por %p78, %p79
      %p81 = scmp.ne.s32.totalorder %s72, %s73
      %p82 = scmp.eq.s32.totalorder %s20, 0
      %p83 = por %p81, %p82
      %p84 = scmp.ne.s32.totalorder %s72, %s73
      %p85 = scmp.eq.s32.totalorder %s21, 1
      %p86 = por %p84, %p85
      %p88 = scmp.ne.s32.totalorder %s73, %s87
      %p89 = scmp.eq.s32.totalorder %s21, 0
      %p90 = por %p88, %p89
      %s92 = sadd.s32 %s91, 1
      %p95 = scmp.eq.s32.totalorder %s15, 1
      %p96 = scmp.ne.s32.totalorder %s91, %s93
      %p97 = scmp.eq.s32.totalorder %s15, 0
      %p98 = por %p96, %p97
      %p99 = scmp.ne.s32.totalorder %s91, %s93
      %p100 = scmp.eq.s32.totalorder %s20, 1
      %p101 = por %p99, %p100
      %p102 = scmp.ne.s32.totalorder %s93, %s94
      %p103 = scmp.eq.s32.totalorder %s20, 0
      %p104 = por %p102, %p103
      %p105 = scmp.ne.s32.totalorder %s93, %s94
      %p106 = scmp.eq.s32.totalorder %s21, 1
      %p107 = por %p105, %p106
      %p109 = scmp.ne.s32.totalorder %s94, %s108
      %p110 = scmp.eq.s32.totalorder %s21, 0
      %p111 = por %p109, %p110
      %s113 = sadd.s32 %s112, 1
      %p116 = scmp.eq.s32.totalorder %s15, 1
      %p117 = scmp.ne.s32.totalorder %s112, %s114
      %p118 = scmp.eq.s32.totalorder %s15, 0
      %p119 = por %p117, %p118
      %p120 = scmp.ne.s32.totalorder %s112, %s114
      %p121 = scmp.eq.s32.totalorder %s20, 1
      %p122 = por %p120, %p121
      %p123 = scmp.ne.s32.totalorder %s114, %s115
      %p124 = scmp.eq.s32.totalorder %s20, 0
      %p125 = por %p123, %p124
      %p126 = scmp.ne.s32.totalorder %s114, %s115
      %p127 = scmp.eq.s32.totalorder %s21, 1
      %p128 = por %p126, %p127
      %p130 = scmp.ne.s32.totalorder %s115, %s129
      %p131 = scmp.eq.s32.totalorder %s21, 0
      %p132 = por %p130, %p131
      %s134 = sadd.s32 %s133, 1
      %p137 = scmp.eq.s32.totalorder %s15, 1
      %p138 = scmp.ne.s32.totalorder %s133, %s135
      %p139 = scmp.eq.s32.totalorder %s15, 0
      %p140 = por %p138, %p139
      %p141 = scmp.ne.s32.totalorder %s133, %s135
      %p142 = scmp.eq.s32.totalorder %s20, 1
      %p143 = por %p141, %p142
      %p144 = scmp.ne.s32.totalorder %s135, %s136
      %p145 = scmp.eq.s32.totalorder %s20, 0
      %p146 = por %p144, %p145
      %p147 = scmp.ne.s32.totalorder %s135, %s136
      %p148 = scmp.eq.s32.totalorder %s21, 1
      %p149 = por %p147, %p148
      %p151 = scmp.ne.s32.totalorder %s136, %s150
      %p152 = scmp.eq.s32.totalorder %s21, 0
      %p153 = por %p151, %p152
      %s154 = ssub.s32 %s15, %s22
      %p155 = scmp.eq.s32.totalorder %s154, 0
      %s157 = sadd.s32 %s156, 1
      %s158 = scalar_select %p155, %s156, %s157
      %p161 = pneg %p155
      %p162 = scmp.eq.s32.totalorder %s15, 1
      %p163 = por %p161, %p162
      %p164 = scmp.ne.s32.totalorder %s156, %s159
      %p165 = scmp.eq.s32.totalorder %s15, 0
      %p166 = por %p164, %p165
      %p167 = scmp.ne.s32.totalorder %s156, %s159
      %p168 = scmp.eq.s32.totalorder %s20, 1
      %p169 = por %p167, %p168
      %p170 = scmp.ne.s32.totalorder %s159, %s160
      %p171 = scmp.eq.s32.totalorder %s20, 0
      %p172 = por %p170, %p171
      %p173 = scmp.ne.s32.totalorder %s159, %s160
      %p174 = scmp.eq.s32.totalorder %s21, 1
      %p175 = por %p173, %p174
      %p177 = scmp.ne.s32.totalorder %s160, %s176
      %p178 = scmp.eq.s32.totalorder %s21, 0
      %p179 = por %p177, %p178
      %p180 = scmp.le.s32.totalorder 1, %s15
      %p181 = scmp.lt.s32.totalorder %s15, 3
      %p182 = pnand %p180, %p181
      %p183 = pneg %p182
      // Predicated region
      $region9: #{tpu_custom_call.1} parent=5 // pred_check
        _
      $region10: #{tpu_custom_call.1} parent=5 // pred_check_branch
        %185 = sbr.rel (%p182) target = $region12
      $region11: #{tpu_custom_call.1} parent=5 // pred_region
        %s186 = ssub.s32 %s15, 1
        // Predicated region
        $region13: #{tpu_custom_call.1} parent=11 // pred_check
          %p187 = pneg %p62
        $region14: #{tpu_custom_call.1} parent=11 // pred_check_branch
          %189 = sbr.rel (%p187) target = $region16
        $region15: #{tpu_custom_call.1} parent=11 // pred_region
          _
        $region16: #{tpu_custom_call.1} parent=11 // pred_fallthru
          _
        // Predicated region
        $region17: #{tpu_custom_call.1} parent=11 // pred_check
          %p190 = pneg %p83
        $region18: #{tpu_custom_call.1} parent=11 // pred_check_branch
          %192 = sbr.rel (%p190) target = $region20
        $region19: #{tpu_custom_call.1} parent=11 // pred_region
          _
        $region20: #{tpu_custom_call.1} parent=11 // pred_fallthru
          _
        // Predicated region
        $region21: #{tpu_custom_call.1} parent=11 // pred_check
          %p193 = pneg %p104
        $region22: #{tpu_custom_call.1} parent=11 // pred_check_branch
          %195 = sbr.rel (%p193) target = $region24
        $region23: #{tpu_custom_call.1} parent=11 // pred_region
          _
        $region24: #{tpu_custom_call.1} parent=11 // pred_fallthru
          _
        // Predicated region
        $region25: #{tpu_custom_call.1} parent=11 // pred_check
          %p196 = pneg %p125
        $region26: #{tpu_custom_call.1} parent=11 // pred_check_branch
          %198 = sbr.rel (%p196) target = $region28
        $region27: #{tpu_custom_call.1} parent=11 // pred_region
          _
        $region28: #{tpu_custom_call.1} parent=11 // pred_fallthru
          _
        // Predicated region
        $region29: #{tpu_custom_call.1} parent=11 // pred_check
          %p199 = pneg %p146
        $region30: #{tpu_custom_call.1} parent=11 // pred_check_branch
          %201 = sbr.rel (%p199) target = $region32
        $region31: #{tpu_custom_call.1} parent=11 // pred_region
          _
        $region32: #{tpu_custom_call.1} parent=11 // pred_fallthru
          _
      $region12: #{tpu_custom_call.1} parent=5 // pred_fallthru
        _
      %p202 = scmp.lt.s32.totalorder %s15, 2
      // Predicated region
      $region33: #{tpu_custom_call.1} parent=5 // pred_check
        %p203 = pneg %p202
      $region34: #{tpu_custom_call.1} parent=5 // pred_check_branch
        %205 = sbr.rel (%p203) target = $region36
      $region35: #{tpu_custom_call.1} parent=5 // pred_region
        // Predicated region
        $region37: #{tpu_custom_call.1} parent=35 // pred_check
          %p206 = pneg %p35
        $region38: #{tpu_custom_call.1} parent=35 // pred_check_branch
          %208 = sbr.rel (%p206) target = $region40
        $region39: #{tpu_custom_call.1} parent=35 // pred_region
          %p209 = scmp.lt.s32.totalorder %s15, 1
          %s210 = scalar_select %p209, %s15, 1
          %s211 = smul.addr %s210, 8
          %s212 = scalar_lea.vmem %s0, %s211
        $region40: #{tpu_custom_call.1} parent=35 // pred_fallthru
          _
      $region36: #{tpu_custom_call.1} parent=5 // pred_fallthru
        _
      %p213 = scmp.le.s32.totalorder 1, %s15
      %p214 = scmp.lt.s32.totalorder %s15, 3
      %p215 = pnand %p213, %p214
      %p216 = pneg %p215
      // Predicated region
      $region41: #{tpu_custom_call.1} parent=5 // pred_check
        _
      $region42: #{tpu_custom_call.1} parent=5 // pred_check_branch
        %218 = sbr.rel (%p215) target = $region44
      $region43: #{tpu_custom_call.1} parent=5 // pred_region
        %s219 = ssub.s32 %s15, 1
        %p220 = scmp.lt.s32.totalorder %s20, 1
        %s221 = scalar_select %p220, %s20, 1
        %s222 = smul.addr %s221, 8
        %s223 = scalar_lea.vmem %s0, %s222
        %p224 = pneg %p41
        %p225 = pneg %p38
        %p226 = pneg %p62
        %p227 = pneg %p59
        %p228 = pneg %p83
        %p229 = pneg %p80
        %p230 = pneg %p104
        %p231 = pneg %p101
        %p232 = pneg %p125
        %p233 = pneg %p122
        %p234 = pneg %p146
        %p235 = pneg %p143
        %p236 = pneg %p172
        %p237 = pneg %p169
        %s238 = sand.u32 %s159, 1
        %s239 = scalar_lea.sflag [#allocation3], %s238
        %s240 = sand.u32 %s159, 1
        %s241 = smul.addr %s240, 8
        %s242 = scalar_lea.vmem [#allocation2], %s241
        %p243 = scmp.lt.s32.totalorder %s20, 1
        %s244 = scalar_select %p243, %s20, 1
        %s245 = smul.addr %s244, 8
        %s246 = scalar_lea.vmem %s0, %s245
        %v247 = vld [vmem:[%s246] sm:$0xff]
        %v248 = vld [vmem:[%s1] sm:$0xff]
        %v249 = vld [vmem:[%s1 + $0x8] sm:$0xff]
        %v250 = vld [vmem:[%s1 + $0x10] sm:$0xff]
        %v251 = vld [vmem:[%s1 + $0x18] sm:$0xff]
        %v252 = vld [vmem:[%s2] sm:$0x1]
        %v254 = vlaneseq
        %v255 = vshrl.u32 %v254, 7
        %v256 = vsub.s32 0, %v255
        %v257 = vrot.slane %v252, %v256
        %vm259 = vcmask 261120
        %v261 = vsel %vm259, %v247, 0
        %263 = vmatprep.subr.mxu0 0.0
        %264 = vmatpush1.msra.mxu0 0.0
        %265 = vmatprep.subr.mxu0 0.0
        %266 = vmatpush1.msra.mxu0 0.0
        %267 = vmatprep.subr.mxu0 0.0
        %268 = vmatpush1.msra.mxu0 0.0
        %269 = vmatprep.subr.mxu0 0.0
        %270 = vmatpush1.msra.mxu0 0.0
        %271 = vmatprep.subr.mxu0 0.0
        %272 = vmatpush1.msra.mxu0 0.0
        %273 = vmatprep.subr.mxu0 0.0
        %274 = vmatpush1.msra.mxu0 0.0
        %275 = vmatprep.subr.mxu0 0.0
        %276 = vmatpush1.msra.mxu0 0.0
        %277 = vmatprep.subr.mxu0 0.0
        %278 = vmatpush1.msra.mxu0 0.0
        %279 = vmatprep.subr.mxu0 0.0
        %280 = vmatpush1.msra.mxu0 0.0
        %281 = vmatprep.subr.mxu0 0.0
        %282 = vmatpush1.msra.mxu0 0.0
        %283 = vmatprep.subr.mxu0 0.0
        %284 = vmatpush1.msra.mxu0 0.0
        %285 = vmatprep.subr.mxu0 0.0
        %286 = vmatpush1.msra.mxu0 0.0
        %287 = vmatprep.subr.mxu0 0.0
        %288 = vmatpush1.msra.mxu0 %v251
        %289 = vmatprep.subr.mxu0 0.0
        %290 = vmatpush1.msra.mxu0 %v250
        %291 = vmatprep.subr.mxu0 0.0
        %292 = vmatpush1.msra.mxu0 %v249
        %293 = vmatprep.subr.mxu0 0.0
        %294 = vmatpush1.msra.mxu0 %v248
        %295 = vmatprep.subr.mxu0 0.0
        %296 = vmatpush2.msra.mxu0 0.0
        %297 = vmatprep.subr.mxu0 0.0
        %298 = vmatpush2.msra.mxu0 0.0
        %299 = vmatprep.subr.mxu0 0.0
        %300 = vmatpush2.msra.mxu0 0.0
        %301 = vmatprep.subr.mxu0 0.0
        %302 = vmatpush2.msra.mxu0 0.0
        %303 = vmatprep.subr.mxu0 0.0
        %304 = vmatpush2.msra.mxu0 0.0
        %305 = vmatprep.subr.mxu0 0.0
        %306 = vmatpush2.msra.mxu0 0.0
        %307 = vmatprep.subr.mxu0 0.0
        %308 = vmatpush2.msra.mxu0 0.0
        %309 = vmatprep.subr.mxu0 0.0
        %310 = vmatpush2.msra.mxu0 0.0
        %311 = vmatprep.subr.mxu0 0.0
        %312 = vmatpush2.msra.mxu0 0.0
        %313 = vmatprep.subr.mxu0 0.0
        %314 = vmatpush2.msra.mxu0 0.0
        %315 = vmatprep.subr.mxu0 0.0
        %316 = vmatpush2.msra.mxu0 0.0
        %317 = vmatprep.subr.mxu0 0.0
        %318 = vmatpush2.msra.mxu0 0.0
        %319 = vmatprep.subr.mxu0 0.0
        %320 = vmatpush2.msra.mxu0 0.0
        %321 = vmatprep.subr.mxu0 0.0
        %322 = vmatpush2.msra.mxu0 0.0
        %323 = vmatprep.subr.mxu0 0.0
        %324 = vmatpush2.msra.mxu0 0.0
        %325 = vmatprep.subr.mxu0 0.0
        %326 = vmatpush2.msra.mxu0 0.0
        %327 = vmatprep.mubr.f32.mxu0 0.0
        %328 = vmatmul.mubr.f32.gmra.mxu0 %v261
        %v329 = vpop.f32.mrf.mxu0
        %v330 = vadd.f32 %v257, %v329
        %v331 = vpop.f32.mrf.mxu0
        %332 = vdwg.mxu0
        %v333 = vld [vmem:[%s3] sm:$0xff]
        %v334 = vld [vmem:[%s3 + $0x8] sm:$0xff]
        %v335 = vld [vmem:[%s3 + $0x10] sm:$0xff]
        %v336 = vld [vmem:[%s3 + $0x18] sm:$0xff]
        %v337 = vld [vmem:[%s3 + $0x20] sm:$0xff]
        %v338 = vld [vmem:[%s3 + $0x28] sm:$0xff]
        %v339 = vld [vmem:[%s3 + $0x30] sm:$0xff]
        %v340 = vld [vmem:[%s3 + $0x38] sm:$0xff]
        %v341 = vld [vmem:[%s3 + $0x40] sm:$0xff]
        %v342 = vld [vmem:[%s3 + $0x48] sm:$0xff]
        %v343 = vld [vmem:[%s3 + $0x50] sm:$0xff]
        %v344 = vld [vmem:[%s3 + $0x58] sm:$0xff]
        %v345 = vld [vmem:[%s3 + $0x60] sm:$0xff]
        %v346 = vld [vmem:[%s3 + $0x68] sm:$0xff]
        %v347 = vld [vmem:[%s3 + $0x70] sm:$0xff]
        %v348 = vld [vmem:[%s3 + $0x78] sm:$0xff]
        %v349 = vld [vmem:[%s5] sm:$0x1]
        %v351 = vlaneseq
        %v352 = vshrl.u32 %v351, 7
        %v353 = vsub.s32 0, %v352
        %v354 = vrot.slane %v349, %v353
        %356 = vmatprep.subr.mxu0 0.0
        %357 = vmatpush1.msra.mxu0 %v348
        %358 = vmatprep.subr.mxu0 0.0
        %359 = vmatpush1.msra.mxu0 %v347
        %360 = vmatprep.subr.mxu0 0.0
        %361 = vmatpush1.msra.mxu0 %v346
        %362 = vmatprep.subr.mxu0 0.0
        %363 = vmatpush1.msra.mxu0 %v345
        %364 = vmatprep.subr.mxu0 0.0
        %365 = vmatpush1.msra.mxu0 %v344
        %366 = vmatprep.subr.mxu0 0.0
        %367 = vmatpush1.msra.mxu0 %v343
        %368 = vmatprep.subr.mxu0 0.0
        %369 = vmatpush1.msra.mxu0 %v342
        %370 = vmatprep.subr.mxu0 0.0
        %371 = vmatpush1.msra.mxu0 %v341
        %372 = vmatprep.subr.mxu0 0.0
        %373 = vmatpush1.msra.mxu0 %v340
        %374 = vmatprep.subr.mxu0 0.0
        %375 = vmatpush1.msra.mxu0 %v339
        %376 = vmatprep.subr.mxu0 0.0
        %377 = vmatpush1.msra.mxu0 %v338
        %378 = vmatprep.subr.mxu0 0.0
        %379 = vmatpush1.msra.mxu0 %v337
        %380 = vmatprep.subr.mxu0 0.0
        %381 = vmatpush1.msra.mxu0 %v336
        %382 = vmatprep.subr.mxu0 0.0
        %383 = vmatpush1.msra.mxu0 %v335
        %384 = vmatprep.subr.mxu0 0.0
        %385 = vmatpush1.msra.mxu0 %v334
        %386 = vmatprep.subr.mxu0 0.0
        %387 = vmatpush1.msra.mxu0 %v333
        %388 = vmatprep.subr.mxu0 0.0
        %389 = vmatpush2.msra.mxu0 0.0
        %390 = vmatprep.subr.mxu0 0.0
        %391 = vmatpush2.msra.mxu0 0.0
        %392 = vmatprep.subr.mxu0 0.0
        %393 = vmatpush2.msra.mxu0 0.0
        %394 = vmatprep.subr.mxu0 0.0
        %395 = vmatpush2.msra.mxu0 0.0
        %396 = vmatprep.subr.mxu0 0.0
        %397 = vmatpush2.msra.mxu0 0.0
        %398 = vmatprep.subr.mxu0 0.0
        %399 = vmatpush2.msra.mxu0 0.0
        %400 = vmatprep.subr.mxu0 0.0
        %401 = vmatpush2.msra.mxu0 0.0
        %402 = vmatprep.subr.mxu0 0.0
        %403 = vmatpush2.msra.mxu0 0.0
        %404 = vmatprep.subr.mxu0 0.0
        %405 = vmatpush2.msra.mxu0 0.0
        %406 = vmatprep.subr.mxu0 0.0
        %407 = vmatpush2.msra.mxu0 0.0
        %408 = vmatprep.subr.mxu0 0.0
        %409 = vmatpush2.msra.mxu0 0.0
        %410 = vmatprep.subr.mxu0 0.0
        %411 = vmatpush2.msra.mxu0 0.0
        %412 = vmatprep.subr.mxu0 0.0
        %413 = vmatpush2.msra.mxu0 0.0
        %414 = vmatprep.subr.mxu0 0.0
        %415 = vmatpush2.msra.mxu0 0.0
        %416 = vmatprep.subr.mxu0 0.0
        %417 = vmatpush2.msra.mxu0 0.0
        %418 = vmatprep.subr.mxu0 0.0
        %419 = vmatpush2.msra.mxu0 0.0
        %420 = vmatprep.mubr.f32.mxu0 0.0
        %421 = vmatmul.mubr.f32.gmra.mxu0 %v330
        %v422 = vpop.f32.mrf.mxu0
        %v423 = vadd.f32 %v354, %v422
        %v424 = vpop.f32.mrf.mxu0
        %425 = vdwg.mxu0
        %v426 = vld [vmem:[%s4] sm:$0xff]
        %vm427 = vcmask 64512
        %v429 = vsel %vm427, %v423, 0
        %431 = vmatprep.subr.mxu0 0.0
        %432 = vmatpush1.msra.mxu0 0.0
        %433 = vmatprep.subr.mxu0 0.0
        %434 = vmatpush1.msra.mxu0 0.0
        %435 = vmatprep.subr.mxu0 0.0
        %436 = vmatpush1.msra.mxu0 0.0
        %437 = vmatprep.subr.mxu0 0.0
        %438 = vmatpush1.msra.mxu0 0.0
        %439 = vmatprep.subr.mxu0 0.0
        %440 = vmatpush1.msra.mxu0 0.0
        %441 = vmatprep.subr.mxu0 0.0
        %442 = vmatpush1.msra.mxu0 0.0
        %443 = vmatprep.subr.mxu0 0.0
        %444 = vmatpush1.msra.mxu0 0.0
        %445 = vmatprep.subr.mxu0 0.0
        %446 = vmatpush1.msra.mxu0 0.0
        %447 = vmatprep.subr.mxu0 0.0
        %448 = vmatpush1.msra.mxu0 0.0
        %449 = vmatprep.subr.mxu0 0.0
        %450 = vmatpush1.msra.mxu0 0.0
        %451 = vmatprep.subr.mxu0 0.0
        %452 = vmatpush1.msra.mxu0 0.0
        %453 = vmatprep.subr.mxu0 0.0
        %454 = vmatpush1.msra.mxu0 0.0
        %455 = vmatprep.subr.mxu0 0.0
        %456 = vmatpush1.msra.mxu0 0.0
        %457 = vmatprep.subr.mxu0 0.0
        %458 = vmatpush1.msra.mxu0 0.0
        %459 = vmatprep.subr.mxu0 0.0
        %460 = vmatpush1.msra.mxu0 0.0
        %461 = vmatprep.subr.mxu0 0.0
        %462 = vmatpush1.msra.mxu0 %v426
        %463 = vmatprep.subr.mxu0 0.0
        %464 = vmatpush2.msra.mxu0 0.0
        %465 = vmatprep.subr.mxu0 0.0
        %466 = vmatpush2.msra.mxu0 0.0
        %467 = vmatprep.subr.mxu0 0.0
        %468 = vmatpush2.msra.mxu0 0.0
        %469 = vmatprep.subr.mxu0 0.0
        %470 = vmatpush2.msra.mxu0 0.0
        %471 = vmatprep.subr.mxu0 0.0
        %472 = vmatpush2.msra.mxu0 0.0
        %473 = vmatprep.subr.mxu0 0.0
        %474 = vmatpush2.msra.mxu0 0.0
        %475 = vmatprep.subr.mxu0 0.0
        %476 = vmatpush2.msra.mxu0 0.0
        %477 = vmatprep.subr.mxu0 0.0
        %478 = vmatpush2.msra.mxu0 0.0
        %479 = vmatprep.subr.mxu0 0.0
        %480 = vmatpush2.msra.mxu0 0.0
        %481 = vmatprep.subr.mxu0 0.0
        %482 = vmatpush2.msra.mxu0 0.0
        %483 = vmatprep.subr.mxu0 0.0
        %484 = vmatpush2.msra.mxu0 0.0
        %485 = vmatprep.subr.mxu0 0.0
        %486 = vmatpush2.msra.mxu0 0.0
        %487 = vmatprep.subr.mxu0 0.0
        %488 = vmatpush2.msra.mxu0 0.0
        %489 = vmatprep.subr.mxu0 0.0
        %490 = vmatpush2.msra.mxu0 0.0
        %491 = vmatprep.subr.mxu0 0.0
        %492 = vmatpush2.msra.mxu0 0.0
        %493 = vmatprep.subr.mxu0 0.0
        %494 = vmatpush2.msra.mxu0 0.0
        %495 = vmatprep.mubr.f32.mxu0 0.0
        %496 = vmatmul.mubr.f32.gmra.mxu0 %v429
        %v497 = vpop.f32.mrf.mxu0
        %v498 = vadd.f32 0.0, %v497
        %v499 = vpop.f32.mrf.mxu0
        %500 = vdwg.mxu0
        %v501 = vadd.f32 %v330, %v498
        %502 = vst [vmem:[%s242] sm:$0xff] %v501
        %s503 = sand.u32 %s159, 1
        %s504 = scalar_lea.sflag [#allocation3], %s503
        %s505 = sand.u32 %s159, 1
        %s506 = smul.addr %s505, 8
        %s507 = scalar_lea.vmem [#allocation2], %s506
        // Predicated region
        $region45: #{tpu_custom_call.1} parent=43 // pred_check
          %p508 = pneg %p169
        $region46: #{tpu_custom_call.1} parent=43 // pred_check_branch
          %510 = sbr.rel (%p508) target = $region48
        $region47: #{tpu_custom_call.1} parent=43 // pred_region
          %s512 = ssub.s32 128, 128
          %513 = vsyncadd %s504, %s512
          %s514 = smul.addr %s20, 128
          %s515 = scalar_lea.hbm %s6, %s514
          %s517 = sshll.u32 %s507, 4
          %s518 = int_to_ptr.vmem [resolvable:$true] %s517
          %520 = dma.vmem_to_hbm [thread:$0]  %s518, 128, %s515, %s504
        $region48: #{tpu_custom_call.1} parent=43 // pred_fallthru
          _
      $region44: #{tpu_custom_call.1} parent=5 // pred_fallthru
        _
      %p521 = scmp.le.s32.totalorder 2, %s15
      // Predicated region
      $region49: #{tpu_custom_call.1} parent=5 // pred_check
        %p522 = pneg %p521
      $region50: #{tpu_custom_call.1} parent=5 // pred_check_branch
        %524 = sbr.rel (%p522) target = $region52
      $region51: #{tpu_custom_call.1} parent=5 // pred_region
        %s525 = ssub.s32 %s15, 2
        // Predicated region
        $region53: #{tpu_custom_call.1} parent=51 // pred_check
          %p526 = pneg %p175
        $region54: #{tpu_custom_call.1} parent=51 // pred_check_branch
          %528 = sbr.rel (%p526) target = $region56
        $region55: #{tpu_custom_call.1} parent=51 // pred_region
          %s529 = sand.u32 %s160, 1
          %s530 = scalar_lea.sflag [#allocation3], %s529
          %s531 = sand.u32 %s160, 1
          %s532 = smul.addr %s531, 8
          %s533 = scalar_lea.vmem [#allocation2], %s532
          %534 = dma.done %s530, 128
        $region56: #{tpu_custom_call.1} parent=51 // pred_fallthru
          _
      $region52: #{tpu_custom_call.1} parent=5 // pred_fallthru
        _
    $region6: #{tpu_custom_call.1} parent=1 // loop_footer
      %s19 = sadd.s32 1, %s15
    $region7: #{tpu_custom_call.1} parent=1 // loop_footer_branch
      %14 = sbr.rel target = $region3
    $region8: #{tpu_custom_call.1} parent=1 // loop_exit
      _
    %535 = vsyncpa [#allocation3], 1
    %s536 = scalar_lea.sflag [#allocation3], 1
    %537 = vsyncpa %s536, 1

</llo_original>
